<compile_context>
chip_gen: v6e
topology: v6e:2x2x1
jax: 0.10.0
libtpu: 0.0.40
codegen_flags: <defaults>
</compile_context>

<pallas_src>
import functools

import jax
import jax.numpy as jnp
from jax.experimental import pallas as pl
from jax.experimental.pallas import tpu as pltpu

LN_EPS = 1e-5  # nn.LayerNorm default


def _cdiv(a, b):
    return (a + b - 1) // b


def _round_up(n, m):
    return ((n + m - 1) // m) * m


def _normalize_cols(x, n):
    """LayerNorm statistics over axis 0 (feature axis = sublanes); batch = lanes.
    Two-pass mean/variance in f32 for numerical parity with nn.LayerNorm."""
    inv_n = 1.0 / float(n)
    mean = jnp.sum(x, axis=0, keepdims=True) * inv_n
    d = x - mean
    var = jnp.sum(d * d, axis=0, keepdims=True) * inv_n
    return d * jax.lax.rsqrt(var + LN_EPS)


def dueling_dqn_kernel(x_ref, w0_ref, w1_ref, w2_ref, vec_ref, out_ref, *,
                       h0, h1, action_dim, head_rows, matmul_dtype):
    # Transposed layout: features on sublanes, batch on the 128-lane axis.
    xt = x_ref[...]                                    # (S, TILE_B) bf16

    # Packed per-feature parameters: one column each, broadcast over lanes.
    b0 = vec_ref[:h0, 0:1]
    g0 = vec_ref[:h0, 1:2]
    be0 = vec_ref[:h0, 2:3]
    b1 = vec_ref[:2 * h1, 3:4]            # [bv1 ; ba1]
    g1 = vec_ref[:2 * h1, 4:5]            # [gv1 ; ga1]
    be1 = vec_ref[:2 * h1, 5:6]           # [bev1 ; bea1]
    b2 = vec_ref[:head_rows, 6:7]         # [ba2 ; bv2 ; 0-pad]

    # --- feature layer: Linear + ReLU + LayerNorm (Dropout = identity) ---
    h = jnp.dot(w0_ref[...], xt, preferred_element_type=jnp.float32) + b0
    h = jnp.maximum(h, 0.0)
    h = _normalize_cols(h, h0) * g0 + be0

    # --- fused value||advantage hidden layer: one matmul, per-stream LN ---
    va = jnp.dot(w1_ref[...], h.astype(matmul_dtype),
                 preferred_element_type=jnp.float32) + b1
    va = jnp.maximum(va, 0.0)
    v_n = _normalize_cols(va[:h1, :], h1)   # value-stream rows [0:h1]
    a_n = _normalize_cols(va[h1:, :], h1)   # advantage-stream rows [h1:2h1]
    # Order [value ; advantage] must match the [Wv1^T ; Wa1^T] stacking and the
    # block-diagonal head layout below.
    va = jnp.concatenate([v_n, a_n], axis=0) * g1 + be1

    # --- fused heads: block-diagonal (head_rows, 2*h1) matmul ---
    head = jnp.dot(w2_ref[...], va.astype(matmul_dtype),
                   preferred_element_type=jnp.float32) + b2
    a = head[:action_dim, :]
    v = head[action_dim:action_dim + 1, :]
    a_mean = jnp.sum(a, axis=0, keepdims=True) * (1.0 / float(action_dim))
    out_ref[...] = v + (a - a_mean)         # dueling combine, (A, TILE_B)


def dueling_dqn_forward(x, params, *, tile_b=None, matmul_dtype=jnp.bfloat16):
    """x: (B, state_dim) float32; params: dict of weights (see init_params)."""
    if x.ndim == 1:
        x = x[None, :]
    batch, state_dim = x.shape
    h0 = params["w0"].shape[1]
    h1 = params["wv1"].shape[1]
    action_dim = params["wa2"].shape[1]
    head_w = action_dim + 1
    head_rows = _round_up(head_w, 8)

    # --- one-time parameter fusion / packing (transposed, batch-in-lanes) ---
    w0t = params["w0"].T.astype(matmul_dtype)                              # (h0, S)
    w1t = jnp.concatenate([params["wv1"].T, params["wa1"].T], 0)           # (2h1, h0)
    w1t = w1t.astype(matmul_dtype)
    # Block-diagonal head^T: rows [0:A] = advantage head (reads rows [h1:2h1]
    # of va), row A = value head (reads rows [0:h1]); rows beyond are zero pad.
    w2t = jnp.zeros((head_rows, 2 * h1), jnp.float32)
    w2t = w2t.at[:action_dim, h1:].set(params["wa2"].T)
    w2t = w2t.at[action_dim, :h1].set(params["wv2"].reshape(-1))
    w2t = w2t.astype(matmul_dtype)

    vec_h = _round_up(max(h0, 2 * h1, head_rows), 8)
    cols = [
        params["b0"].reshape(-1),
        params["g0"].reshape(-1),
        params["be0"].reshape(-1),
        jnp.concatenate([params["bv1"].reshape(-1), params["ba1"].reshape(-1)]),
        jnp.concatenate([params["gv1"].reshape(-1), params["ga1"].reshape(-1)]),
        jnp.concatenate([params["bev1"].reshape(-1), params["bea1"].reshape(-1)]),
        jnp.concatenate([params["ba2"].reshape(-1), params["bv2"].reshape(-1)]),
    ]
    vec = jnp.zeros((vec_h, 8), jnp.float32)
    for c, v in enumerate(cols):
        vec = vec.at[: v.shape[0], c].set(v)

    # --- batch tiling on the lane axis ---
    m = _cdiv(batch, 128)                          # 128-lane groups of batch
    if tile_b is None:
        # >=2 grid steps when possible (v7x: 2 TensorCores); tile <= 2048 lanes
        grid_n = max(2 if m >= 2 else 1, _cdiv(m, 16))
        lane_groups = _cdiv(m, grid_n)
    else:
        lane_groups = max(1, _round_up(tile_b, 128) // 128)
    tile_b = lane_groups * 128
    grid_n = _cdiv(m, lane_groups)
    padded_b = grid_n * tile_b                     # bounded padding (<= ~grid_n*128)

    # Single fused pad + transpose + bf16 cast on the tiny (B, S) input.
    xt = jnp.pad(x.astype(matmul_dtype), ((0, padded_b - batch), (0, 0))).T  # (S, padded_b)

    kernel = functools.partial(
        dueling_dqn_kernel, h0=h0, h1=h1, action_dim=action_dim,
        head_rows=head_rows, matmul_dtype=matmul_dtype)

    out = pl.pallas_call(
        kernel,
        out_shape=jax.ShapeDtypeStruct((action_dim, padded_b), jnp.float32),
        grid=(grid_n,),
        in_specs=[
            pl.BlockSpec((state_dim, tile_b), lambda i: (0, i)),   # xT (pipelined, lane-dense)
            pl.BlockSpec((h0, state_dim), lambda i: (0, 0)),       # W0^T (resident)
            pl.BlockSpec((2 * h1, h0), lambda i: (0, 0)),          # fused [Wv1|Wa1]^T
            pl.BlockSpec((head_rows, 2 * h1), lambda i: (0, 0)),   # block-diag head^T
            pl.BlockSpec((vec_h, 8), lambda i: (0, 0)),            # packed bias/LN columns
        ],
        out_specs=pl.BlockSpec((action_dim, tile_b), lambda i: (0, i)),
        compiler_params=pltpu.CompilerParams(
            dimension_semantics=("parallel",),
        ),
    )(xt, w0t, w1t, w2t, vec)
    return out[:, :batch].T


def init_params(key, state_dim, action_dim, hidden_sizes):
    """Kaiming-normal (fan_in, relu) Linear weights, zero biases, default
    LayerNorm affine (gamma=1, beta=0). Matches DQNetwork._init_weights."""
    assert len(hidden_sizes) == 2, "script instantiates hidden_sizes=[h0, h1]"
    h0, h1 = hidden_sizes

    def kaiming(key, fan_in, fan_out):
        std = jnp.sqrt(2.0 / fan_in)
        return jax.random.normal(key, (fan_in, fan_out), jnp.float32) * std

    ks = jax.random.split(key, 5)
    p = {}
    p["w0"] = kaiming(ks[0], state_dim, h0)
    p["b0"] = jnp.zeros((1, h0), jnp.float32)
    p["g0"] = jnp.ones((1, h0), jnp.float32)
    p["be0"] = jnp.zeros((1, h0), jnp.float32)
    p["wv1"] = kaiming(ks[1], h0, h1)
    p["bv1"] = jnp.zeros((1, h1), jnp.float32)
    p["gv1"] = jnp.ones((1, h1), jnp.float32)
    p["bev1"] = jnp.zeros((1, h1), jnp.float32)
    p["wv2"] = kaiming(ks[2], h1, 1)
    p["bv2"] = jnp.zeros((1, 1), jnp.float32)
    p["wa1"] = kaiming(ks[3], h0, h1)
    p["ba1"] = jnp.zeros((1, h1), jnp.float32)
    p["ga1"] = jnp.ones((1, h1), jnp.float32)
    p["bea1"] = jnp.zeros((1, h1), jnp.float32)
    p["wa2"] = kaiming(ks[4], h1, action_dim)
    p["ba2"] = jnp.zeros((1, action_dim), jnp.float32)
    return p


def reference_forward(x, p, matmul_dtype=jnp.bfloat16):
    """Pure-JAX reference of DuelingDQN.forward (eval mode), mirroring the
    kernel's bf16 matmul operands / f32 accumulate."""
    def mm(a, w, b):
        return jnp.dot(a.astype(matmul_dtype), w.astype(matmul_dtype),
                       preferred_element_type=jnp.float32) + b

    def ln(x, g, b):
        m = jnp.mean(x, axis=-1, keepdims=True)
        v = jnp.mean((x - m) ** 2, axis=-1, keepdims=True)
        return (x - m) / jnp.sqrt(v + LN_EPS) * g + b

    h = ln(jnp.maximum(mm(x, p["w0"], p["b0"]), 0.0), p["g0"], p["be0"])
    v = ln(jnp.maximum(mm(h, p["wv1"], p["bv1"]), 0.0), p["gv1"], p["bev1"])
    v = mm(v, p["wv2"], p["bv2"])
    a = ln(jnp.maximum(mm(h, p["wa1"], p["ba1"]), 0.0), p["ga1"], p["bea1"])
    a = mm(a, p["wa2"], p["ba2"])
    return v + (a - jnp.mean(a, axis=1, keepdims=True))


if __name__ == "__main__":
    state_dim, action_dim = 16, 4
    hidden_sizes = [32, 32]
    batch = 2

    key = jax.random.PRNGKey(0)
    k_x, k_p = jax.random.split(key)
    x = jax.random.normal(k_x, (batch, state_dim), jnp.float32)
    params = init_params(k_p, state_dim, action_dim, hidden_sizes)

    q = dueling_dqn_forward(x, params)
    q = jax.block_until_ready(q)

    q_ref = reference_forward(x, params)
    assert q.shape == (batch, action_dim)
    # bf16 matmul operands -> compare against bf16-mirroring reference with
    # a tolerance that covers MXU/XLA accumulation-order differences.
    assert jnp.allclose(q, q_ref, atol=2e-2, rtol=2e-2), (q, q_ref)
    print("KERNEL_OK")
</pallas_src>

<mosaic_0001>
module attributes {stable_mosaic.version = 11 : i64} {
  func.func @dueling_dqn_kernel(%arg0: i32, %arg1: memref<16x128xbf16, #tpu.memory_space<vmem>>, %arg2: memref<32x16xbf16, #tpu.memory_space<vmem>>, %arg3: memref<64x32xbf16, #tpu.memory_space<vmem>>, %arg4: memref<8x64xbf16, #tpu.memory_space<vmem>>, %arg5: memref<64x8xf32, #tpu.memory_space<vmem>>, %arg6: memref<4x128xf32, #tpu.memory_space<vmem>>) attributes {dimension_semantics = [#tpu.dimension_semantics<parallel>], iteration_bounds = array<i64: 1>, scalar_prefetch = 0 : i64, scratch_operands = 0 : i64, tpu.core_type = #tpu.core_type<tc>, window_params = [{transform_indices = @transform_0, window_bounds = array<i64: 16, 128>}, {pipeline_mode = #tpu.pipeline_mode<synchronous>, transform_indices = @transform_1, window_bounds = array<i64: 32, 16>}, {pipeline_mode = #tpu.pipeline_mode<synchronous>, transform_indices = @transform_2, window_bounds = array<i64: 64, 32>}, {pipeline_mode = #tpu.pipeline_mode<synchronous>, transform_indices = @transform_3, window_bounds = array<i64: 8, 64>}, {pipeline_mode = #tpu.pipeline_mode<synchronous>, transform_indices = @transform_4, window_bounds = array<i64: 64, 8>}, {transform_indices = @transform_5, window_bounds = array<i64: 4, 128>}]} {
    %c0 = arith.constant 0 : index
    %c0_0 = arith.constant 0 : index
    %0 = vector.load %arg1[%c0, %c0_0] : memref<16x128xbf16, #tpu.memory_space<vmem>>, vector<16x128xbf16>
    %c0_1 = arith.constant 0 : index
    %c0_2 = arith.constant 0 : index
    %1 = vector.load %arg5[%c0_1, %c0_2] : memref<64x8xf32, #tpu.memory_space<vmem>>, vector<32x1xf32>
    %c0_3 = arith.constant 0 : index
    %c1 = arith.constant 1 : index
    %2 = vector.load %arg5[%c0_3, %c1] : memref<64x8xf32, #tpu.memory_space<vmem>>, vector<32x1xf32>
    %c0_4 = arith.constant 0 : index
    %c2 = arith.constant 2 : index
    %3 = vector.load %arg5[%c0_4, %c2] : memref<64x8xf32, #tpu.memory_space<vmem>>, vector<32x1xf32>
    %c0_5 = arith.constant 0 : index
    %c3 = arith.constant 3 : index
    %4 = vector.load %arg5[%c0_5, %c3] : memref<64x8xf32, #tpu.memory_space<vmem>>, vector<64x1xf32>
    %c0_6 = arith.constant 0 : index
    %c4 = arith.constant 4 : index
    %5 = vector.load %arg5[%c0_6, %c4] : memref<64x8xf32, #tpu.memory_space<vmem>>, vector<64x1xf32>
    %c0_7 = arith.constant 0 : index
    %c5 = arith.constant 5 : index
    %6 = vector.load %arg5[%c0_7, %c5] : memref<64x8xf32, #tpu.memory_space<vmem>>, vector<64x1xf32>
    %c0_8 = arith.constant 0 : index
    %c6 = arith.constant 6 : index
    %7 = vector.load %arg5[%c0_8, %c6] : memref<64x8xf32, #tpu.memory_space<vmem>>, vector<8x1xf32>
    %c0_9 = arith.constant 0 : index
    %c0_10 = arith.constant 0 : index
    %8 = vector.load %arg2[%c0_9, %c0_10] : memref<32x16xbf16, #tpu.memory_space<vmem>>, vector<32x16xbf16>
    %cst = arith.constant dense<0.000000e+00> : vector<32x128xf32>
    %9 = tpu.matmul %8, %0, %cst {dimension_numbers = #tpu.dot_dimension_numbers<[1], [0], [0], [1], [0, 0, 1, 1], [], []>} : vector<32x16xbf16>, vector<16x128xbf16>, vector<32x128xf32> -> vector<32x128xf32>
    %10 = vector.broadcast %1 : vector<32x1xf32> to vector<32x128xf32>
    %11 = arith.addf %9, %10 : vector<32x128xf32>
    %cst_11 = arith.constant 0.000000e+00 : f32
    %12 = vector.broadcast %cst_11 : f32 to vector<32x128xf32>
    %13 = arith.maximumf %11, %12 : vector<32x128xf32>
    %cst_12 = arith.constant dense<0.000000e+00> : vector<128xf32>
    %14 = vector.multi_reduction <add>, %13, %cst_12 [0] : vector<32x128xf32> to vector<128xf32>
    %15 = vector.shape_cast %14 : vector<128xf32> to vector<1x128xf32>
    %cst_13 = arith.constant 3.125000e-02 : f32
    %16 = vector.broadcast %cst_13 : f32 to vector<1x128xf32>
    %17 = arith.mulf %15, %16 : vector<1x128xf32>
    %18 = vector.broadcast %17 : vector<1x128xf32> to vector<32x128xf32>
    %19 = arith.subf %13, %18 : vector<32x128xf32>
    %20 = arith.mulf %19, %19 : vector<32x128xf32>
    %cst_14 = arith.constant dense<0.000000e+00> : vector<128xf32>
    %21 = vector.multi_reduction <add>, %20, %cst_14 [0] : vector<32x128xf32> to vector<128xf32>
    %22 = vector.shape_cast %21 : vector<128xf32> to vector<1x128xf32>
    %cst_15 = arith.constant 3.125000e-02 : f32
    %23 = vector.broadcast %cst_15 : f32 to vector<1x128xf32>
    %24 = arith.mulf %22, %23 : vector<1x128xf32>
    %cst_16 = arith.constant 9.99999974E-6 : f32
    %25 = vector.broadcast %cst_16 : f32 to vector<1x128xf32>
    %26 = arith.addf %24, %25 : vector<1x128xf32>
    %27 = math.rsqrt %26 : vector<1x128xf32>
    %28 = vector.broadcast %27 : vector<1x128xf32> to vector<32x128xf32>
    %29 = arith.mulf %19, %28 : vector<32x128xf32>
    %30 = vector.broadcast %2 : vector<32x1xf32> to vector<32x128xf32>
    %31 = arith.mulf %29, %30 : vector<32x128xf32>
    %32 = vector.broadcast %3 : vector<32x1xf32> to vector<32x128xf32>
    %33 = arith.addf %31, %32 : vector<32x128xf32>
    %c0_17 = arith.constant 0 : index
    %c0_18 = arith.constant 0 : index
    %34 = vector.load %arg3[%c0_17, %c0_18] : memref<64x32xbf16, #tpu.memory_space<vmem>>, vector<64x32xbf16>
    %35 = arith.truncf %33 : vector<32x128xf32> to vector<32x128xbf16>
    %cst_19 = arith.constant dense<0.000000e+00> : vector<64x128xf32>
    %36 = tpu.matmul %34, %35, %cst_19 {dimension_numbers = #tpu.dot_dimension_numbers<[1], [0], [0], [1], [0, 0, 1, 1], [], []>} : vector<64x32xbf16>, vector<32x128xbf16>, vector<64x128xf32> -> vector<64x128xf32>
    %37 = vector.broadcast %4 : vector<64x1xf32> to vector<64x128xf32>
    %38 = arith.addf %36, %37 : vector<64x128xf32>
    %cst_20 = arith.constant 0.000000e+00 : f32
    %39 = vector.broadcast %cst_20 : f32 to vector<64x128xf32>
    %40 = arith.maximumf %38, %39 : vector<64x128xf32>
    %41 = vector.extract_strided_slice %40 {offsets = [0, 0], sizes = [32, 128], strides = [1, 1]} : vector<64x128xf32> to vector<32x128xf32>
    %cst_21 = arith.constant dense<0.000000e+00> : vector<128xf32>
    %42 = vector.multi_reduction <add>, %41, %cst_21 [0] : vector<32x128xf32> to vector<128xf32>
    %43 = vector.shape_cast %42 : vector<128xf32> to vector<1x128xf32>
    %cst_22 = arith.constant 3.125000e-02 : f32
    %44 = vector.broadcast %cst_22 : f32 to vector<1x128xf32>
    %45 = arith.mulf %43, %44 : vector<1x128xf32>
    %46 = vector.broadcast %45 : vector<1x128xf32> to vector<32x128xf32>
    %47 = arith.subf %41, %46 : vector<32x128xf32>
    %48 = arith.mulf %47, %47 : vector<32x128xf32>
    %cst_23 = arith.constant dense<0.000000e+00> : vector<128xf32>
    %49 = vector.multi_reduction <add>, %48, %cst_23 [0] : vector<32x128xf32> to vector<128xf32>
    %50 = vector.shape_cast %49 : vector<128xf32> to vector<1x128xf32>
    %cst_24 = arith.constant 3.125000e-02 : f32
    %51 = vector.broadcast %cst_24 : f32 to vector<1x128xf32>
    %52 = arith.mulf %50, %51 : vector<1x128xf32>
    %cst_25 = arith.constant 9.99999974E-6 : f32
    %53 = vector.broadcast %cst_25 : f32 to vector<1x128xf32>
    %54 = arith.addf %52, %53 : vector<1x128xf32>
    %55 = math.rsqrt %54 : vector<1x128xf32>
    %56 = vector.broadcast %55 : vector<1x128xf32> to vector<32x128xf32>
    %57 = arith.mulf %47, %56 : vector<32x128xf32>
    %58 = vector.extract_strided_slice %40 {offsets = [32, 0], sizes = [32, 128], strides = [1, 1]} : vector<64x128xf32> to vector<32x128xf32>
    %cst_26 = arith.constant dense<0.000000e+00> : vector<128xf32>
    %59 = vector.multi_reduction <add>, %58, %cst_26 [0] : vector<32x128xf32> to vector<128xf32>
    %60 = vector.shape_cast %59 : vector<128xf32> to vector<1x128xf32>
    %cst_27 = arith.constant 3.125000e-02 : f32
    %61 = vector.broadcast %cst_27 : f32 to vector<1x128xf32>
    %62 = arith.mulf %60, %61 : vector<1x128xf32>
    %63 = vector.broadcast %62 : vector<1x128xf32> to vector<32x128xf32>
    %64 = arith.subf %58, %63 : vector<32x128xf32>
    %65 = arith.mulf %64, %64 : vector<32x128xf32>
    %cst_28 = arith.constant dense<0.000000e+00> : vector<128xf32>
    %66 = vector.multi_reduction <add>, %65, %cst_28 [0] : vector<32x128xf32> to vector<128xf32>
    %67 = vector.shape_cast %66 : vector<128xf32> to vector<1x128xf32>
    %cst_29 = arith.constant 3.125000e-02 : f32
    %68 = vector.broadcast %cst_29 : f32 to vector<1x128xf32>
    %69 = arith.mulf %67, %68 : vector<1x128xf32>
    %cst_30 = arith.constant 9.99999974E-6 : f32
    %70 = vector.broadcast %cst_30 : f32 to vector<1x128xf32>
    %71 = arith.addf %69, %70 : vector<1x128xf32>
    %72 = math.rsqrt %71 : vector<1x128xf32>
    %73 = vector.broadcast %72 : vector<1x128xf32> to vector<32x128xf32>
    %74 = arith.mulf %64, %73 : vector<32x128xf32>
    %75 = tpu.concatenate %57, %74 in 0 : vector<32x128xf32>, vector<32x128xf32> -> vector<64x128xf32>
    %76 = vector.broadcast %5 : vector<64x1xf32> to vector<64x128xf32>
    %77 = arith.mulf %75, %76 : vector<64x128xf32>
    %78 = vector.broadcast %6 : vector<64x1xf32> to vector<64x128xf32>
    %79 = arith.addf %77, %78 : vector<64x128xf32>
    %c0_31 = arith.constant 0 : index
    %c0_32 = arith.constant 0 : index
    %80 = vector.load %arg4[%c0_31, %c0_32] : memref<8x64xbf16, #tpu.memory_space<vmem>>, vector<8x64xbf16>
    %81 = arith.truncf %79 : vector<64x128xf32> to vector<64x128xbf16>
    %cst_33 = arith.constant dense<0.000000e+00> : vector<8x128xf32>
    %82 = tpu.matmul %80, %81, %cst_33 {dimension_numbers = #tpu.dot_dimension_numbers<[1], [0], [0], [1], [0, 0, 1, 1], [], []>} : vector<8x64xbf16>, vector<64x128xbf16>, vector<8x128xf32> -> vector<8x128xf32>
    %83 = vector.broadcast %7 : vector<8x1xf32> to vector<8x128xf32>
    %84 = arith.addf %82, %83 : vector<8x128xf32>
    %85 = vector.extract_strided_slice %84 {offsets = [0, 0], sizes = [4, 128], strides = [1, 1]} : vector<8x128xf32> to vector<4x128xf32>
    %86 = vector.extract_strided_slice %84 {offsets = [4, 0], sizes = [1, 128], strides = [1, 1]} : vector<8x128xf32> to vector<1x128xf32>
    %cst_34 = arith.constant dense<0.000000e+00> : vector<128xf32>
    %87 = vector.multi_reduction <add>, %85, %cst_34 [0] : vector<4x128xf32> to vector<128xf32>
    %88 = vector.shape_cast %87 : vector<128xf32> to vector<1x128xf32>
    %cst_35 = arith.constant 2.500000e-01 : f32
    %89 = vector.broadcast %cst_35 : f32 to vector<1x128xf32>
    %90 = arith.mulf %88, %89 : vector<1x128xf32>
    %91 = vector.broadcast %90 : vector<1x128xf32> to vector<4x128xf32>
    %92 = arith.subf %85, %91 : vector<4x128xf32>
    %93 = vector.broadcast %86 : vector<1x128xf32> to vector<4x128xf32>
    %94 = arith.addf %93, %92 : vector<4x128xf32>
    %c0_36 = arith.constant 0 : index
    %c0_37 = arith.constant 0 : index
    %95 = vector.load %arg6[%c0_36, %c0_37] : memref<4x128xf32, #tpu.memory_space<vmem>>, vector<4x128xf32>
    tpu.vector_store %arg6[%c0_36, %c0_37], %94 {strides = array<i32>} : memref<4x128xf32, #tpu.memory_space<vmem>>, vector<4x128xf32>,
    return
  }
  func.func @transform_0(%arg0: i32) -> (i32, i32) {
    %c0_i32 = arith.constant 0 : i32
    %c0_i32_0 = arith.constant 0 : i32
    return %c0_i32, %arg0 : i32, i32
  }
  func.func @transform_1(%arg0: i32) -> (i32, i32) {
    %c0_i32 = arith.constant 0 : i32
    %c0_i32_0 = arith.constant 0 : i32
    %c0_i32_1 = arith.constant 0 : i32
    return %c0_i32, %c0_i32_0 : i32, i32
  }
  func.func @transform_2(%arg0: i32) -> (i32, i32) {
    %c0_i32 = arith.constant 0 : i32
    %c0_i32_0 = arith.constant 0 : i32
    %c0_i32_1 = arith.constant 0 : i32
    return %c0_i32, %c0_i32_0 : i32, i32
  }
  func.func @transform_3(%arg0: i32) -> (i32, i32) {
    %c0_i32 = arith.constant 0 : i32
    %c0_i32_0 = arith.constant 0 : i32
    %c0_i32_1 = arith.constant 0 : i32
    return %c0_i32, %c0_i32_0 : i32, i32
  }
  func.func @transform_4(%arg0: i32) -> (i32, i32) {
    %c0_i32 = arith.constant 0 : i32
    %c0_i32_0 = arith.constant 0 : i32
    %c0_i32_1 = arith.constant 0 : i32
    return %c0_i32, %c0_i32_0 : i32, i32
  }
  func.func @transform_5(%arg0: i32) -> (i32, i32) {
    %c0_i32 = arith.constant 0 : i32
    %c0_i32_0 = arith.constant 0 : i32
    return %c0_i32, %arg0 : i32, i32
  }
}

</mosaic_0001>

<llo_original>
// kernel: tpu_custom_call.1
$region0: #{tpu_custom_call.1}
  #allocation0 [shape = 'u32[]', space=smem, size = 0x4, offset = 0x4, fixed_abs, tag = 'smem constant byte address 0x4 - core index']
  #allocation1 [shape = 'u32[144,128]{1,0:T(1,128)}', space=vmem, size = 0x12000, scoped, tag = 'internal scratch']
  %s0 = inlined_call_operand.vmem [shape: bf16[16,128], index: 0, kind: input, shape index: {}]
  %s1 = inlined_call_operand.vmem [shape: bf16[32,16], index: 1, kind: input, shape index: {}]
  %s2 = inlined_call_operand.vmem [shape: bf16[64,32], index: 2, kind: input, shape index: {}]
  %s3 = inlined_call_operand.vmem [shape: bf16[8,64], index: 3, kind: input, shape index: {}]
  %s4 = inlined_call_operand.vmem [shape: f32[64,8], index: 4, kind: input, shape index: {}]
  %s5 = inlined_call_operand.hbm [shape: f32[4,128], index: 5, kind: output, shape index: {}]
  %s6 = sld [smem:[#allocation0]]
  $region30: #{tpu_custom_call.1} parent=0
    _
  %s8 = ssub.s32 1, %s6
  %s9 = scalar_select 0, %s8, %s6
  $region1: #{tpu_custom_call.1} parent=0
    #allocation2 [shape = 'u8[2048]{0}', space=vmem, size = 0x800, scoped, tag = 'output window, operand 0, single buffered']
    #allocation3 [shape = 's32[1]{0}', space=sflag, size = 0x4, scoped, tag = 'scoped memory for tpu_custom_call.1']
    %10 = vsyncpa [#allocation3], 0
    // Predicated region
    $region2: #{tpu_custom_call.1} parent=1 // pred_check
      _
    $region3: #{tpu_custom_call.1} parent=1 // pred_check_branch
      %12 = sbr.rel (0) target = $region5
    $region4: #{tpu_custom_call.1} parent=1 // pred_region
      _
    $region5: #{tpu_custom_call.1} parent=1 // pred_fallthru
      _
    // Predicated region
    $region6: #{tpu_custom_call.1} parent=1 // pred_check
      _
    $region7: #{tpu_custom_call.1} parent=1 // pred_check_branch
      %14 = sbr.rel (0) target = $region9
    $region8: #{tpu_custom_call.1} parent=1 // pred_region
      _
    $region9: #{tpu_custom_call.1} parent=1 // pred_fallthru
      _
    // Predicated region
    $region10: #{tpu_custom_call.1} parent=1 // pred_check
      _
    $region11: #{tpu_custom_call.1} parent=1 // pred_check_branch
      %16 = sbr.rel (0) target = $region13
    $region12: #{tpu_custom_call.1} parent=1 // pred_region
      _
    $region13: #{tpu_custom_call.1} parent=1 // pred_fallthru
      _
    // Predicated region
    $region14: #{tpu_custom_call.1} parent=1 // pred_check
      _
    $region15: #{tpu_custom_call.1} parent=1 // pred_check_branch
      %18 = sbr.rel (0) target = $region17
    $region16: #{tpu_custom_call.1} parent=1 // pred_region
      _
    $region17: #{tpu_custom_call.1} parent=1 // pred_fallthru
      _
    // Predicated region
    $region18: #{tpu_custom_call.1} parent=1 // pred_check
      _
    $region19: #{tpu_custom_call.1} parent=1 // pred_check_branch
      %20 = sbr.rel (0) target = $region21
    $region20: #{tpu_custom_call.1} parent=1 // pred_region
      _
    $region21: #{tpu_custom_call.1} parent=1 // pred_fallthru
      _
    %v22 = vld [vmem:[%s0] sm:$0xf]
    %v23 = vld [vmem:[%s0 + $0x4] sm:$0xf]
    %v24 = vld [vmem:[%s4] sm:$0xff]
    %v25 = vld [vmem:[%s4 + $0x8] sm:$0xff]
    %v26 = vld [vmem:[%s4 + $0x10] sm:$0xff]
    %v27 = vld [vmem:[%s4 + $0x18] sm:$0xff]
    %v28 = vld [vmem:[%s4 + $0x20] sm:$0xff]
    %v29 = vld [vmem:[%s4 + $0x28] sm:$0xff]
    %v30 = vld [vmem:[%s4 + $0x30] sm:$0xff]
    %v31 = vld [vmem:[%s4 + $0x38] sm:$0xff]
    %v32 = vld [vmem:[%s1] sm:$0xf]
    %v33 = vld [vmem:[%s1 + $0x4] sm:$0xf]
    %v34 = vld [vmem:[%s1 + $0x8] sm:$0xf]
    %v35 = vld [vmem:[%s1 + $0xc] sm:$0xf]
    %37 = vset.pattern.permute.xlu0 0
    %38 = vperm.xlu0 %37, %v24
    %v39 = vpop.permute.xlu0 %38
    %42 = vset.pattern.permute.xlu0 0
    %43 = vperm.xlu0 %42, %v25
    %v44 = vpop.permute.xlu0 %43
    %47 = vset.pattern.permute.xlu0 0
    %48 = vperm.xlu0 %47, %v26
    %v49 = vpop.permute.xlu0 %48
    %52 = vset.pattern.permute.xlu0 0
    %53 = vperm.xlu0 %52, %v27
    %v54 = vpop.permute.xlu0 %53
    %v60 = vunpack.c.l.b16 %v32
    %v61 = vunpack.c.l.b16 %v33
    %v62 = vunpack.c.l.b16 %v34
    %v63 = vunpack.c.l.b16 %v35
    %v64 = vpack.c.b16 %v61, %v60
    %v65 = vpack.c.b16 %v63, %v62
    %v68 = vunpack.c.l.b16 %v22
    %v69 = vunpack.c.l.b16 %v23
    %v70 = vpack.c.b16 %v69, %v68
    %vm72 = vcmask 130048
    %v74 = vsel %vm72, %v64, 0
    %v77 = vsel %vm72, %v65, 0
    %79 = vmatprep.subr.bf16.mxu0 0
    %80 = vmatpush1.bf16.msra.mxu0 0
    %81 = vmatprep.subr.bf16.mxu0 0
    %82 = vmatpush1.bf16.msra.mxu0 0
    %83 = vmatprep.subr.bf16.mxu0 0
    %84 = vmatpush1.bf16.msra.mxu0 0
    %85 = vmatprep.subr.bf16.mxu0 0
    %86 = vmatpush1.bf16.msra.mxu0 0
    %87 = vmatprep.subr.bf16.mxu0 0
    %88 = vmatpush1.bf16.msra.mxu0 0
    %89 = vmatprep.subr.bf16.mxu0 0
    %90 = vmatpush1.bf16.msra.mxu0 0
    %91 = vmatprep.subr.bf16.mxu0 0
    %92 = vmatpush1.bf16.msra.mxu0 0
    %93 = vmatprep.subr.bf16.mxu0 0
    %94 = vmatpush1.bf16.msra.mxu0 %v70
    %95 = vmatprep.subr.bf16.mxu0 0
    %96 = vmatpush2.bf16.msra.mxu0 0
    %97 = vmatprep.subr.bf16.mxu0 0
    %98 = vmatpush2.bf16.msra.mxu0 0
    %99 = vmatprep.subr.bf16.mxu0 0
    %100 = vmatpush2.bf16.msra.mxu0 0
    %101 = vmatprep.subr.bf16.mxu0 0
    %102 = vmatpush2.bf16.msra.mxu0 0
    %103 = vmatprep.subr.bf16.mxu0 0
    %104 = vmatpush2.bf16.msra.mxu0 0
    %105 = vmatprep.subr.bf16.mxu0 0
    %106 = vmatpush2.bf16.msra.mxu0 0
    %107 = vmatprep.subr.bf16.mxu0 0
    %108 = vmatpush2.bf16.msra.mxu0 0
    %109 = vmatprep.subr.bf16.mxu0 0
    %110 = vmatpush2.bf16.msra.mxu0 0
    %111 = vmatprep.mubr.bf16.mxu0 0
    %112 = vmatmul.mubr.bf16.gmra.mxu0 %v74
    %v113 = vpop.f32.mrf.mxu0
    %v114 = vadd.f32 %v39, %v113
    %v115 = vpop.f32.mrf.mxu0
    %v116 = vpop.f32.mrf.mxu0
    %v117 = vadd.f32 %v44, %v116
    %v118 = vpop.f32.mrf.mxu0
    %119 = vmatprep.mubr.bf16.mxu0 0
    %120 = vmatmul.mubr.bf16.gmra.mxu0 %v77
    %v121 = vpop.f32.mrf.mxu0
    %v122 = vadd.f32 %v49, %v121
    %v123 = vpop.f32.mrf.mxu0
    %v124 = vpop.f32.mrf.mxu0
    %v125 = vadd.f32 %v54, %v124
    %v126 = vpop.f32.mrf.mxu0
    %127 = vdwg.mxu0
    %v128 = vmax.f32 %v114, 0.0
    %v129 = vmax.f32 %v117, 0.0
    %v130 = vmax.f32 %v122, 0.0
    %v131 = vmax.f32 %v125, 0.0
    %v132 = vadd.f32 %v128, %v129
    %v133 = vadd.f32 %v132, %v130
    %v134 = vadd.f32 %v133, %v131
    %v135 = vrot.slane %v134, 4
    %v136 = vadd.f32 %v134, %v135
    %v137 = vrot.slane %v136, 2
    %v138 = vadd.f32 %v136, %v137
    %v139 = vrot.slane %v138, 1
    %v140 = vadd.f32 %v138, %v139
    %v141 = vmul.f32 %v140, 0.03125
    %v142 = vsub.f32 %v128, %v141
    %v143 = vsub.f32 %v129, %v141
    %v144 = vsub.f32 %v130, %v141
    %v145 = vsub.f32 %v131, %v141
    %v146 = vmul.f32 %v142, %v142
    %v147 = vmul.f32 %v143, %v143
    %v148 = vmul.f32 %v144, %v144
    %v149 = vmul.f32 %v145, %v145
    %v150 = vadd.f32 %v146, %v147
    %v151 = vadd.f32 %v150, %v148
    %v152 = vadd.f32 %v151, %v149
    %v153 = vrot.slane %v152, 4
    %v154 = vadd.f32 %v152, %v153
    %v155 = vrot.slane %v154, 2
    %v156 = vadd.f32 %v154, %v155
    %v157 = vrot.slane %v156, 1
    %v158 = vadd.f32 %v156, %v157
    %v159 = vmul.f32 %v158, 0.03125
    %v160 = vadd.f32 %v159, 1e-05
    %v161 = vrsqrt.pop %v160
    %v162 = vmul.f32 %v142, %v161
    %v163 = vmul.f32 %v143, %v161
    %v164 = vmul.f32 %v144, %v161
    %v165 = vmul.f32 %v145, %v161
    %166 = vset.pattern.permute.xlu0 1
    %167 = vperm.xlu0 %166, %v24
    %v168 = vpop.permute.xlu0 %167
    %170 = vset.pattern.permute.xlu0 1
    %171 = vperm.xlu0 %170, %v25
    %v172 = vpop.permute.xlu0 %171
    %174 = vset.pattern.permute.xlu0 1
    %175 = vperm.xlu0 %174, %v26
    %v176 = vpop.permute.xlu0 %175
    %178 = vset.pattern.permute.xlu0 1
    %179 = vperm.xlu0 %178, %v27
    %v180 = vpop.permute.xlu0 %179
    %v182 = vmul.f32 %v162, %v168
    %v183 = vmul.f32 %v163, %v172
    %v184 = vmul.f32 %v164, %v176
    %v185 = vmul.f32 %v165, %v180
    %186 = vset.pattern.permute.xlu0 2
    %187 = vperm.xlu0 %186, %v24
    %v188 = vpop.permute.xlu0 %187
    %190 = vset.pattern.permute.xlu0 2
    %191 = vperm.xlu0 %190, %v25
    %v192 = vpop.permute.xlu0 %191
    %194 = vset.pattern.permute.xlu0 2
    %195 = vperm.xlu0 %194, %v26
    %v196 = vpop.permute.xlu0 %195
    %198 = vset.pattern.permute.xlu0 2
    %199 = vperm.xlu0 %198, %v27
    %v200 = vpop.permute.xlu0 %199
    %v202 = vadd.f32 %v182, %v188
    %v203 = vadd.f32 %v183, %v192
    %v204 = vadd.f32 %v184, %v196
    %v205 = vadd.f32 %v185, %v200
    %v206 = vld [vmem:[%s2] sm:$0xf]
    %v207 = vld [vmem:[%s2 + $0x4] sm:$0xf]
    %v208 = vld [vmem:[%s2 + $0x8] sm:$0xf]
    %v209 = vld [vmem:[%s2 + $0xc] sm:$0xf]
    %v210 = vld [vmem:[%s2 + $0x10] sm:$0xf]
    %v211 = vld [vmem:[%s2 + $0x14] sm:$0xf]
    %v212 = vld [vmem:[%s2 + $0x18] sm:$0xf]
    %v213 = vld [vmem:[%s2 + $0x1c] sm:$0xf]
    %v214 = vpack.c.bf16 %v203, %v202
    %v215 = vpack.c.bf16 %v205, %v204
    %216 = vset.pattern.permute.xlu0 3
    %217 = vperm.xlu0 %216, %v24
    %v218 = vpop.permute.xlu0 %217
    %220 = vset.pattern.permute.xlu0 3
    %221 = vperm.xlu0 %220, %v25
    %v222 = vpop.permute.xlu0 %221
    %224 = vset.pattern.permute.xlu0 3
    %225 = vperm.xlu0 %224, %v26
    %v226 = vpop.permute.xlu0 %225
    %228 = vset.pattern.permute.xlu0 3
    %229 = vperm.xlu0 %228, %v27
    %v230 = vpop.permute.xlu0 %229
    %233 = vset.pattern.permute.xlu0 3
    %234 = vperm.xlu0 %233, %v28
    %v235 = vpop.permute.xlu0 %234
    %238 = vset.pattern.permute.xlu0 3
    %239 = vperm.xlu0 %238, %v29
    %v240 = vpop.permute.xlu0 %239
    %243 = vset.pattern.permute.xlu0 3
    %244 = vperm.xlu0 %243, %v30
    %v245 = vpop.permute.xlu0 %244
    %248 = vset.pattern.permute.xlu0 3
    %249 = vperm.xlu0 %248, %v31
    %v250 = vpop.permute.xlu0 %249
    %v260 = vunpack.c.l.b16 %v206
    %v261 = vunpack.c.l.b16 %v207
    %v262 = vunpack.c.l.b16 %v208
    %v263 = vunpack.c.l.b16 %v209
    %v264 = vunpack.c.l.b16 %v210
    %v265 = vunpack.c.l.b16 %v211
    %v266 = vunpack.c.l.b16 %v212
    %v267 = vunpack.c.l.b16 %v213
    %v268 = vpack.c.b16 %v261, %v260
    %v269 = vpack.c.b16 %v263, %v262
    %v270 = vpack.c.b16 %v265, %v264
    %v271 = vpack.c.b16 %v267, %v266
    %vm272 = vcmask 261120
    %v274 = vsel %vm272, %v268, 0
    %v277 = vsel %vm272, %v269, 0
    %v280 = vsel %vm272, %v270, 0
    %v283 = vsel %vm272, %v271, 0
    %285 = vmatprep.subr.bf16.mxu0 0
    %286 = vmatpush1.bf16.msra.mxu0 0
    %287 = vmatprep.subr.bf16.mxu0 0
    %288 = vmatpush1.bf16.msra.mxu0 0
    %289 = vmatprep.subr.bf16.mxu0 0
    %290 = vmatpush1.bf16.msra.mxu0 0
    %291 = vmatprep.subr.bf16.mxu0 0
    %292 = vmatpush1.bf16.msra.mxu0 0
    %293 = vmatprep.subr.bf16.mxu0 0
    %294 = vmatpush1.bf16.msra.mxu0 0
    %295 = vmatprep.subr.bf16.mxu0 0
    %296 = vmatpush1.bf16.msra.mxu0 0
    %297 = vmatprep.subr.bf16.mxu0 0
    %298 = vmatpush1.bf16.msra.mxu0 %v215
    %299 = vmatprep.subr.bf16.mxu0 0
    %300 = vmatpush1.bf16.msra.mxu0 %v214
    %301 = vmatprep.subr.bf16.mxu0 0
    %302 = vmatpush2.bf16.msra.mxu0 0
    %303 = vmatprep.subr.bf16.mxu0 0
    %304 = vmatpush2.bf16.msra.mxu0 0
    %305 = vmatprep.subr.bf16.mxu0 0
    %306 = vmatpush2.bf16.msra.mxu0 0
    %307 = vmatprep.subr.bf16.mxu0 0
    %308 = vmatpush2.bf16.msra.mxu0 0
    %309 = vmatprep.subr.bf16.mxu0 0
    %310 = vmatpush2.bf16.msra.mxu0 0
    %311 = vmatprep.subr.bf16.mxu0 0
    %312 = vmatpush2.bf16.msra.mxu0 0
    %313 = vmatprep.subr.bf16.mxu0 0
    %314 = vmatpush2.bf16.msra.mxu0 0
    %315 = vmatprep.subr.bf16.mxu0 0
    %316 = vmatpush2.bf16.msra.mxu0 0
    %317 = vmatprep.mubr.bf16.mxu0 0
    %318 = vmatmul.mubr.bf16.gmra.mxu0 %v274
    %v319 = vpop.f32.mrf.mxu0
    %v320 = vadd.f32 %v218, %v319
    %v321 = vpop.f32.mrf.mxu0
    %v322 = vpop.f32.mrf.mxu0
    %v323 = vadd.f32 %v222, %v322
    %v324 = vpop.f32.mrf.mxu0
    %325 = vmatprep.mubr.bf16.mxu0 0
    %326 = vmatmul.mubr.bf16.gmra.mxu0 %v277
    %v327 = vpop.f32.mrf.mxu0
    %v328 = vadd.f32 %v226, %v327
    %v329 = vpop.f32.mrf.mxu0
    %v330 = vpop.f32.mrf.mxu0
    %v331 = vadd.f32 %v230, %v330
    %v332 = vpop.f32.mrf.mxu0
    %333 = vmatprep.mubr.bf16.mxu0 0
    %334 = vmatmul.mubr.bf16.gmra.mxu0 %v280
    %v335 = vpop.f32.mrf.mxu0
    %v336 = vadd.f32 %v235, %v335
    %v337 = vpop.f32.mrf.mxu0
    %v338 = vpop.f32.mrf.mxu0
    %v339 = vadd.f32 %v240, %v338
    %v340 = vpop.f32.mrf.mxu0
    %341 = vmatprep.mubr.bf16.mxu0 0
    %342 = vmatmul.mubr.bf16.gmra.mxu0 %v283
    %v343 = vpop.f32.mrf.mxu0
    %v344 = vadd.f32 %v245, %v343
    %v345 = vpop.f32.mrf.mxu0
    %v346 = vpop.f32.mrf.mxu0
    %v347 = vadd.f32 %v250, %v346
    %v348 = vpop.f32.mrf.mxu0
    %349 = vdwg.mxu0
    %v350 = vmax.f32 %v320, 0.0
    %v351 = vmax.f32 %v323, 0.0
    %v352 = vmax.f32 %v328, 0.0
    %v353 = vmax.f32 %v331, 0.0
    %v354 = vmax.f32 %v336, 0.0
    %v355 = vmax.f32 %v339, 0.0
    %v356 = vmax.f32 %v344, 0.0
    %v357 = vmax.f32 %v347, 0.0
    %v358 = vadd.f32 %v350, %v351
    %v359 = vadd.f32 %v358, %v352
    %v360 = vadd.f32 %v359, %v353
    %v361 = vrot.slane %v360, 4
    %v362 = vadd.f32 %v360, %v361
    %v363 = vrot.slane %v362, 2
    %v364 = vadd.f32 %v362, %v363
    %v365 = vrot.slane %v364, 1
    %v366 = vadd.f32 %v364, %v365
    %v367 = vmul.f32 %v366, 0.03125
    %v368 = vsub.f32 %v350, %v367
    %v369 = vsub.f32 %v351, %v367
    %v370 = vsub.f32 %v352, %v367
    %v371 = vsub.f32 %v353, %v367
    %v372 = vmul.f32 %v368, %v368
    %v373 = vmul.f32 %v369, %v369
    %v374 = vmul.f32 %v370, %v370
    %v375 = vmul.f32 %v371, %v371
    %v376 = vadd.f32 %v372, %v373
    %v377 = vadd.f32 %v376, %v374
    %v378 = vadd.f32 %v377, %v375
    %v379 = vrot.slane %v378, 4
    %v380 = vadd.f32 %v378, %v379
    %v381 = vrot.slane %v380, 2
    %v382 = vadd.f32 %v380, %v381
    %v383 = vrot.slane %v382, 1
    %v384 = vadd.f32 %v382, %v383
    %v385 = vmul.f32 %v384, 0.03125
    %v386 = vadd.f32 %v385, 1e-05
    %v387 = vrsqrt.pop %v386
    %v388 = vmul.f32 %v368, %v387
    %v389 = vmul.f32 %v369, %v387
    %v390 = vmul.f32 %v370, %v387
    %v391 = vmul.f32 %v371, %v387
    %v392 = vadd.f32 %v354, %v355
    %v393 = vadd.f32 %v392, %v356
    %v394 = vadd.f32 %v393, %v357
    %v395 = vrot.slane %v394, 4
    %v396 = vadd.f32 %v394, %v395
    %v397 = vrot.slane %v396, 2
    %v398 = vadd.f32 %v396, %v397
    %v399 = vrot.slane %v398, 1
    %v400 = vadd.f32 %v398, %v399
    %v401 = vmul.f32 %v400, 0.03125
    %v402 = vsub.f32 %v354, %v401
    %v403 = vsub.f32 %v355, %v401
    %v404 = vsub.f32 %v356, %v401
    %v405 = vsub.f32 %v357, %v401
    %v406 = vmul.f32 %v402, %v402
    %v407 = vmul.f32 %v403, %v403
    %v408 = vmul.f32 %v404, %v404
    %v409 = vmul.f32 %v405, %v405
    %v410 = vadd.f32 %v406, %v407
    %v411 = vadd.f32 %v410, %v408
    %v412 = vadd.f32 %v411, %v409
    %v413 = vrot.slane %v412, 4
    %v414 = vadd.f32 %v412, %v413
    %v415 = vrot.slane %v414, 2
    %v416 = vadd.f32 %v414, %v415
    %v417 = vrot.slane %v416, 1
    %v418 = vadd.f32 %v416, %v417
    %v419 = vmul.f32 %v418, 0.03125
    %v420 = vadd.f32 %v419, 1e-05
    %v421 = vrsqrt.pop %v420
    %v422 = vmul.f32 %v402, %v421
    %v423 = vmul.f32 %v403, %v421
    %v424 = vmul.f32 %v404, %v421
    %v425 = vmul.f32 %v405, %v421
    %426 = vset.pattern.permute.xlu0 4
    %427 = vperm.xlu0 %426, %v24
    %v428 = vpop.permute.xlu0 %427
    %430 = vset.pattern.permute.xlu0 4
    %431 = vperm.xlu0 %430, %v25
    %v432 = vpop.permute.xlu0 %431
    %434 = vset.pattern.permute.xlu0 4
    %435 = vperm.xlu0 %434, %v26
    %v436 = vpop.permute.xlu0 %435
    %438 = vset.pattern.permute.xlu0 4
    %439 = vperm.xlu0 %438, %v27
    %v440 = vpop.permute.xlu0 %439
    %442 = vset.pattern.permute.xlu0 4
    %443 = vperm.xlu0 %442, %v28
    %v444 = vpop.permute.xlu0 %443
    %446 = vset.pattern.permute.xlu0 4
    %447 = vperm.xlu0 %446, %v29
    %v448 = vpop.permute.xlu0 %447
    %450 = vset.pattern.permute.xlu0 4
    %451 = vperm.xlu0 %450, %v30
    %v452 = vpop.permute.xlu0 %451
    %454 = vset.pattern.permute.xlu0 4
    %455 = vperm.xlu0 %454, %v31
    %v456 = vpop.permute.xlu0 %455
    %v458 = vmul.f32 %v388, %v428
    %v459 = vmul.f32 %v389, %v432
    %v460 = vmul.f32 %v390, %v436
    %v461 = vmul.f32 %v391, %v440
    %v462 = vmul.f32 %v422, %v444
    %v463 = vmul.f32 %v423, %v448
    %v464 = vmul.f32 %v424, %v452
    %v465 = vmul.f32 %v425, %v456
    %466 = vset.pattern.permute.xlu0 5
    %467 = vperm.xlu0 %466, %v24
    %v468 = vpop.permute.xlu0 %467
    %470 = vset.pattern.permute.xlu0 5
    %471 = vperm.xlu0 %470, %v25
    %v472 = vpop.permute.xlu0 %471
    %474 = vset.pattern.permute.xlu0 5
    %475 = vperm.xlu0 %474, %v26
    %v476 = vpop.permute.xlu0 %475
    %478 = vset.pattern.permute.xlu0 5
    %479 = vperm.xlu0 %478, %v27
    %v480 = vpop.permute.xlu0 %479
    %482 = vset.pattern.permute.xlu0 5
    %483 = vperm.xlu0 %482, %v28
    %v484 = vpop.permute.xlu0 %483
    %486 = vset.pattern.permute.xlu0 5
    %487 = vperm.xlu0 %486, %v29
    %v488 = vpop.permute.xlu0 %487
    %490 = vset.pattern.permute.xlu0 5
    %491 = vperm.xlu0 %490, %v30
    %v492 = vpop.permute.xlu0 %491
    %494 = vset.pattern.permute.xlu0 5
    %495 = vperm.xlu0 %494, %v31
    %v496 = vpop.permute.xlu0 %495
    %v498 = vadd.f32 %v458, %v468
    %v499 = vadd.f32 %v459, %v472
    %v500 = vadd.f32 %v460, %v476
    %v501 = vadd.f32 %v461, %v480
    %v502 = vadd.f32 %v462, %v484
    %v503 = vadd.f32 %v463, %v488
    %v504 = vadd.f32 %v464, %v492
    %v505 = vadd.f32 %v465, %v496
    %v506 = vld [vmem:[%s3] sm:$0xf]
    %v507 = vpack.c.bf16 %v499, %v498
    %v508 = vpack.c.bf16 %v501, %v500
    %v509 = vpack.c.bf16 %v503, %v502
    %v510 = vpack.c.bf16 %v505, %v504
    %511 = vset.pattern.permute.xlu0 6
    %512 = vperm.xlu0 %511, %v24
    %v513 = vpop.permute.xlu0 %512
    %vm515 = vcmask 523264
    %v517 = vsel %vm515, %v506, 0
    %519 = vmatprep.subr.bf16.mxu0 0
    %520 = vmatpush1.bf16.msra.mxu0 0
    %521 = vmatprep.subr.bf16.mxu0 0
    %522 = vmatpush1.bf16.msra.mxu0 0
    %523 = vmatprep.subr.bf16.mxu0 0
    %524 = vmatpush1.bf16.msra.mxu0 0
    %525 = vmatprep.subr.bf16.mxu0 0
    %526 = vmatpush1.bf16.msra.mxu0 0
    %527 = vmatprep.subr.bf16.mxu0 0
    %528 = vmatpush1.bf16.msra.mxu0 %v510
    %529 = vmatprep.subr.bf16.mxu0 0
    %530 = vmatpush1.bf16.msra.mxu0 %v509
    %531 = vmatprep.subr.bf16.mxu0 0
    %532 = vmatpush1.bf16.msra.mxu0 %v508
    %533 = vmatprep.subr.bf16.mxu0 0
    %534 = vmatpush1.bf16.msra.mxu0 %v507
    %535 = vmatprep.subr.bf16.mxu0 0
    %536 = vmatpush2.bf16.msra.mxu0 0
    %537 = vmatprep.subr.bf16.mxu0 0
    %538 = vmatpush2.bf16.msra.mxu0 0
    %539 = vmatprep.subr.bf16.mxu0 0
    %540 = vmatpush2.bf16.msra.mxu0 0
    %541 = vmatprep.subr.bf16.mxu0 0
    %542 = vmatpush2.bf16.msra.mxu0 0
    %543 = vmatprep.subr.bf16.mxu0 0
    %544 = vmatpush2.bf16.msra.mxu0 0
    %545 = vmatprep.subr.bf16.mxu0 0
    %546 = vmatpush2.bf16.msra.mxu0 0
    %547 = vmatprep.subr.bf16.mxu0 0
    %548 = vmatpush2.bf16.msra.mxu0 0
    %549 = vmatprep.subr.bf16.mxu0 0
    %550 = vmatpush2.bf16.msra.mxu0 0
    %551 = vmatprep.mubr.bf16.mxu0 0
    %552 = vmatmul.mubr.bf16.gmra.mxu0 %v517
    %v553 = vpop.f32.mrf.mxu0
    %v554 = vadd.f32 %v513, %v553
    %v555 = vpop.f32.mrf.mxu0
    %v556 = vpop.f32.mrf.mxu0
    %v557 = vpop.f32.mrf.mxu0
    %558 = vdwg.mxu0
    %vm559 = vcmask 1043456
    %v560 = vsel %vm559, %v554, 0.0
    %v561 = vrot.slane %v560, 4
    %v562 = vadd.f32 %v560, %v561
    %v563 = vrot.slane %v562, 2
    %v564 = vadd.f32 %v562, %v563
    %v565 = vrot.slane %v564, 1
    %v566 = vadd.f32 %v564, %v565
    %v567 = vmul.f32 %v566, 0.25
    %v568 = vsub.f32 %v554, %v567
    %v569 = vlaneseq
    %v570 = vshrl.u32 %v569, 7
    %v571 = vsub.s32 4, %v570
    %v572 = vrot.slane %v554, %v571
    %v573 = vadd.f32 %v572, %v568
    %574 = vst [vmem:[#allocation2] sm:$0xf] %v573
    // Predicated region
    $region22: #{tpu_custom_call.1} parent=1 // pred_check
      _
    $region23: #{tpu_custom_call.1} parent=1 // pred_check_branch
      %576 = sbr.rel (0) target = $region25
    $region24: #{tpu_custom_call.1} parent=1 // pred_region
      %s578 = ssub.s32 64, 64
      %579 = vsyncadd [#allocation3], %s578
      %s581 = sshll.u32 [#allocation2], 4
      %s582 = int_to_ptr.vmem [resolvable:$true] %s581
      %584 = dma.vmem_to_hbm [thread:$0]  %s582, 64, %s5, [#allocation3]
    $region25: #{tpu_custom_call.1} parent=1 // pred_fallthru
      _
    // Predicated region
    $region26: #{tpu_custom_call.1} parent=1 // pred_check
      _
    $region27: #{tpu_custom_call.1} parent=1 // pred_check_branch
      %586 = sbr.rel (0) target = $region29
    $region28: #{tpu_custom_call.1} parent=1 // pred_region
      %587 = dma.done [#allocation3], 64
    $region29: #{tpu_custom_call.1} parent=1 // pred_fallthru
      _
    %588 = vsyncpa [#allocation3], 1

</llo_original>
